<compile_context>
chip_gen: v6e
topology: v6e:2x2x1
jax: 0.10.0
libtpu: 0.0.40
codegen_flags: <defaults>
</compile_context>

<pallas_src>
import math
from functools import partial

import jax
import jax.numpy as jnp
from jax.experimental import pallas as pl
from jax.experimental.pallas import tpu as pltpu

_LANE = 128
_MAX_CHUNK_S = 8192              # (8192, 128) f32 zero tile = 4 MiB (2 MiB bf16)
_MAX_INFLIGHT_DMA = 4            # outstanding zeroing DMAs per dropped row
_MIN_PALLAS_BYTES = 512 * 1024   # below this per-row size, fused XLA wins


def _keep_mask(key, batch, p):
    """torch.rand(B).le(p): True -> KEEP the batch element (p is keep prob)."""
    return jax.random.uniform(key, (batch,), dtype=jnp.float32) <= p


def _make_batch_drop_kernel(S, chunk_s, n_chunks, n_inflight):
    """Build the in-place kernel for a (B, S, 128) HBM-resident tensor."""

    def kernel(keep_ref, zeros_ref, x_hbm, o_hbm, dma_sems):
        # keep_ref : (B,) int32 in SMEM (1 = keep, 0 = drop)
        # zeros_ref: (chunk_s, 128) zero tile, VMEM-resident (fetched once)
        # x_hbm    : (B, S, 128) input in HBM; aliased with o_hbm
        # o_hbm    : (B, S, 128) output in HBM (same buffer as x_hbm)
        # dma_sems : (n_inflight,) DMA semaphores
        del x_hbm  # aliased with o_hbm; kept rows need no work at all
        b = pl.program_id(0)

        @pl.when(keep_ref[b] == 0)
        def _zero_row():
            def chunk_copy(c):
                off = c * chunk_s                      # static python ints
                rows = min(chunk_s, S - off)
                return pltpu.make_async_copy(
                    zeros_ref.at[pl.ds(0, rows), :],
                    o_hbm.at[b, pl.ds(off, rows), :],
                    dma_sems.at[c % n_inflight],
                )

            # Keep up to n_inflight write-only DMAs in flight, then drain.
            for c in range(n_chunks):
                if c >= n_inflight:
                    chunk_copy(c - n_inflight).wait()
                chunk_copy(c).start()
            for c in range(max(0, n_chunks - n_inflight), n_chunks):
                chunk_copy(c).wait()

        # Kept rows: nothing to do -- the aliased output already holds x.

    return kernel


def _batch_drop_pallas(x, keep_i32, *, max_chunk_s=_MAX_CHUNK_S):
    """In-place batch drop: output aliases x; only dropped rows generate traffic."""
    B = x.shape[0]
    N = math.prod(x.shape[1:])
    assert N % _LANE == 0 and N > 0, "pallas path requires lane-aligned features"
    S = N // _LANE
    x3 = x.reshape(B, S, _LANE)                        # layout-preserving view

    chunk_s = min(S, max_chunk_s)
    n_chunks = -(-S // chunk_s)
    n_inflight = min(n_chunks, _MAX_INFLIGHT_DMA)
    zero_tile = jnp.zeros((chunk_s, _LANE), dtype=x.dtype)

    kernel = _make_batch_drop_kernel(S, chunk_s, n_chunks, n_inflight)

    out3 = pl.pallas_call(
        kernel,
        out_shape=jax.ShapeDtypeStruct((B, S, _LANE), x.dtype),
        grid_spec=pltpu.PrefetchScalarGridSpec(
            num_scalar_prefetch=0,
            grid=(B,),
            in_specs=[
                # keep mask: whole (B,) int32 vector in SMEM, cheap scalar reads
                pl.BlockSpec(memory_space=pltpu.MemorySpace.SMEM),
                # zero tile: constant block index -> DMA'd into VMEM exactly once
                pl.BlockSpec((chunk_s, _LANE), lambda b: (0, 0)),
                # x: stays in HBM, no auto-pipelined fetches at all
                pl.BlockSpec(memory_space=pl.ANY),
            ],
            out_specs=pl.BlockSpec(memory_space=pl.ANY),   # aliased with x
            scratch_shapes=[pltpu.SemaphoreType.DMA((n_inflight,))],
        ),
        input_output_aliases={2: 0},                       # x3 buffer -> output
        compiler_params=pltpu.CompilerParams(
            dimension_semantics=("parallel",),
            vmem_limit_bytes=32 * 1024 * 1024,
            has_side_effects=True,
        ),
    )(keep_i32, zero_tile, x3)

    return out3.reshape(x.shape)


def batch_drop(x, key, p, training=True, use_pallas=None):
    """JAX/Pallas equivalent of BatchDrop.forward (returns the tensor)."""
    if not training:
        return x

    B = x.shape[0]
    keep = _keep_mask(key, B, p)                           # bool (B,)

    N = math.prod(x.shape[1:])
    per_row_bytes = N * x.dtype.itemsize
    lane_aligned = (N % _LANE == 0) and N > 0
    if use_pallas is None:
        # The donation kernel only pays off once a row is big enough that
        # (1-p)*write-traffic + ~1us/row fixed cost beats XLA's read+write.
        use_pallas = lane_aligned and per_row_bytes >= _MIN_PALLAS_BYTES

    if not (use_pallas and lane_aligned):
        # Fused XLA broadcast-select; also covers ragged (non-lane-aligned) shapes.
        # TODO(synk): handle the ragged tail in-kernel (masked tail DMA) instead of
        # falling back whenever N % 128 != 0.
        bshape = (B,) + (1,) * (x.ndim - 1)
        return jnp.where(keep.reshape(bshape), x, 0).astype(x.dtype)

    return _batch_drop_pallas(x, keep.astype(jnp.int32))


if __name__ == "__main__":
    key = jax.random.PRNGKey(0)
    kx, kdrop = jax.random.split(key)

    B, C, H, W = 2, 4, 16, 16            # N = 1024 -> (B, 8, 128) HBM view
    p = 0.5
    x = jax.random.normal(kx, (B, C, H, W), dtype=jnp.float32)

    keep = _keep_mask(kdrop, B, p)
    ref = jnp.where(keep.reshape(B, 1, 1, 1), x, 0.0).astype(x.dtype)

    # Pallas in-place kernel (forced; auto heuristic would route this tiny size to XLA).
    out = jax.block_until_ready(batch_drop(x, kdrop, p, training=True, use_pallas=True))
    assert out.shape == x.shape and out.dtype == x.dtype
    assert jnp.allclose(out, ref), "mismatch vs reference (pallas path)"

    # Deterministically exercise both kernel branches: all-keep and all-drop.
    out_keep = jax.block_until_ready(batch_drop(x, kdrop, 1.0, training=True, use_pallas=True))
    assert jnp.allclose(out_keep, x), "p=1.0 (all kept) must be identity"
    out_drop = jax.block_until_ready(batch_drop(x, kdrop, -1.0, training=True, use_pallas=True))
    assert jnp.allclose(out_drop, jnp.zeros_like(x)), "p<0 (all dropped) must be zeros"

    # Multi-chunk / multi-DMA path (chunk smaller than the row) on the same data.
    out_mc = jax.block_until_ready(
        _batch_drop_pallas(x, keep.astype(jnp.int32), max_chunk_s=1))
    assert jnp.allclose(out_mc, ref), "mismatch vs reference (multi-chunk path)"

    # Under jit (where aliasing/donation actually avoids the protective copy).
    jitted = jax.jit(partial(batch_drop, p=p, training=True, use_pallas=True))
    out_jit = jax.block_until_ready(jitted(x, kdrop))
    assert jnp.allclose(out_jit, ref), "mismatch vs reference (jit path)"

    # Ragged feature size (N % 128 != 0) takes the XLA fallback -- no pad copies.
    x2 = jax.random.normal(kx, (B, 3, 5, 7), dtype=jnp.float32)
    ref2 = jnp.where(keep.reshape(B, 1, 1, 1), x2, 0.0)
    out2 = jax.block_until_ready(batch_drop(x2, kdrop, p, training=True, use_pallas=True))
    assert jnp.allclose(out2, ref2), "mismatch vs reference (ragged XLA fallback)"

    # Auto heuristic (small rows -> XLA) and eval mode.
    out_auto = jax.block_until_ready(batch_drop(x, kdrop, p, training=True))
    assert jnp.allclose(out_auto, ref), "mismatch vs reference (auto path)"
    assert jnp.array_equal(batch_drop(x, kdrop, p, training=False), x)

    print("KERNEL_OK")
</pallas_src>

<mosaic_0001>
module attributes {stable_mosaic.version = 11 : i64} {
  func.func @kernel(%arg0: i32, %arg1: memref<2xi32, #tpu.memory_space<smem>>, %arg2: memref<8x128xf32, #tpu.memory_space<vmem>>, %arg3: memref<2x8x128xf32, #tpu.memory_space<any>>, %arg4: memref<2x8x128xf32, #tpu.memory_space<any>>, %arg5: memref<1x!tpu.dma_semaphore, #tpu.memory_space<semaphore_mem>>) attributes {dimension_semantics = [#tpu.dimension_semantics<parallel>], iteration_bounds = array<i64: 2>, scalar_prefetch = 0 : i64, scratch_operands = 1 : i64, tpu.core_type = #tpu.core_type<tc>, window_params = [{transform_indices = @transform_0, window_bounds = array<i64: 2>}, {pipeline_mode = #tpu.pipeline_mode<synchronous>, transform_indices = @transform_1, window_bounds = array<i64: 8, 128>}, {}, {}]} {
    %0 = arith.index_cast %arg0 : i32 to index
    %1 = memref.load %arg1[%0] : memref<2xi32, #tpu.memory_space<smem>>
    %c0_i32 = arith.constant 0 : i32
    %2 = arith.cmpi eq, %1, %c0_i32 : i32
    %3 = arith.extui %2 : i1 to i32
    %c0_i32_0 = arith.constant 0 : i32
    %4 = arith.cmpi ne, %3, %c0_i32_0 : i32
    scf.if %4 {
      %c0_i32_1 = arith.constant 0 : i32
      %c0_i32_2 = arith.constant 0 : i32
      %c0_i32_3 = arith.constant 0 : i32
      %5 = tpu.memref_slice %arg2[%c0_i32_2, %c0_i32_3] : memref<8x128xf32, #tpu.memory_space<vmem>> -> memref<8x128xf32, #tpu.memory_space<vmem>>
      %c0_i32_4 = arith.constant 0 : i32
      %c0_i32_5 = arith.constant 0 : i32
      %6 = tpu.memref_slice %arg4[%arg0, %c0_i32_4, %c0_i32_5] : memref<2x8x128xf32, #tpu.memory_space<any>> -> memref<1x8x128xf32, #tpu.memory_space<any>>
      %7 = tpu.memref_squeeze %6 : memref<1x8x128xf32, #tpu.memory_space<any>> -> memref<8x128xf32, #tpu.memory_space<any>>
      %8 = tpu.memref_slice %arg5[%c0_i32_1] : memref<1x!tpu.dma_semaphore, #tpu.memory_space<semaphore_mem>> -> memref<1x!tpu.dma_semaphore, #tpu.memory_space<semaphore_mem>>
      %9 = tpu.memref_squeeze %8 : memref<1x!tpu.dma_semaphore, #tpu.memory_space<semaphore_mem>> -> memref<!tpu.dma_semaphore, #tpu.memory_space<semaphore_mem>>
      tpu.enqueue_dma source(%5 : memref<8x128xf32, #tpu.memory_space<vmem>>) target(%7 : memref<8x128xf32, #tpu.memory_space<any>>) target_semaphore(%9 : memref<!tpu.dma_semaphore, #tpu.memory_space<semaphore_mem>>)
      %c0_i32_6 = arith.constant 0 : i32
      %c0_i32_7 = arith.constant 0 : i32
      %c0_i32_8 = arith.constant 0 : i32
      %10 = tpu.memref_slice %arg2[%c0_i32_7, %c0_i32_8] : memref<8x128xf32, #tpu.memory_space<vmem>> -> memref<8x128xf32, #tpu.memory_space<vmem>>
      %c0_i32_9 = arith.constant 0 : i32
      %c0_i32_10 = arith.constant 0 : i32
      %11 = tpu.memref_slice %arg4[%arg0, %c0_i32_9, %c0_i32_10] : memref<2x8x128xf32, #tpu.memory_space<any>> -> memref<1x8x128xf32, #tpu.memory_space<any>>
      %12 = tpu.memref_squeeze %11 : memref<1x8x128xf32, #tpu.memory_space<any>> -> memref<8x128xf32, #tpu.memory_space<any>>
      %13 = tpu.memref_slice %arg5[%c0_i32_6] : memref<1x!tpu.dma_semaphore, #tpu.memory_space<semaphore_mem>> -> memref<1x!tpu.dma_semaphore, #tpu.memory_space<semaphore_mem>>
      %14 = tpu.memref_squeeze %13 : memref<1x!tpu.dma_semaphore, #tpu.memory_space<semaphore_mem>> -> memref<!tpu.dma_semaphore, #tpu.memory_space<semaphore_mem>>
      tpu.wait_dma2 semaphore(%14 : memref<!tpu.dma_semaphore, #tpu.memory_space<semaphore_mem>>) src(%10 : memref<8x128xf32, #tpu.memory_space<vmem>>) dst(%12 : memref<8x128xf32, #tpu.memory_space<any>>)
    } else {
    }
    return
  }
  func.func @transform_0(%arg0: i32) -> i32 {
    %c0_i32 = arith.constant 0 : i32
    %c0_i32_0 = arith.constant 0 : i32
    return %c0_i32 : i32
  }
  func.func @transform_1(%arg0: i32) -> (i32, i32) {
    %c0_i32 = arith.constant 0 : i32
    %c0_i32_0 = arith.constant 0 : i32
    %c0_i32_1 = arith.constant 0 : i32
    return %c0_i32, %c0_i32_0 : i32, i32
  }
}

</mosaic_0001>

<llo_original>
// kernel: tpu_custom_call.1
$region0: #{tpu_custom_call.1}
  #allocation0 [shape = 'u32[]', space=smem, size = 0x4, offset = 0x4, fixed_abs, tag = 'smem constant byte address 0x4 - core index']
  #allocation1 [shape = 'u32[144,128]{1,0:T(1,128)}', space=vmem, size = 0x12000, scoped, tag = 'internal scratch']
  #allocation2 [shape = 's32[1]{0}', space=sflag, size = 0x4, scoped, tag = 'scratch operand']
  #allocation5 [shape = 's32[]', space=sflag, size = 0x4, offset = 0, fixed_abs, tag = 'sflag constant byte address 0x0 - dummy sync flag']
  #allocation6 [shape = 's32[]', space=sflag, size = 0x4, offset = 0, fixed_abs, tag = 'sflag constant byte address 0x0 - dummy sync flag']
  #allocation7 [shape = 'u32[]', space=smem, size = 0x4, offset = 0x44, fixed_abs, tag = 'smem constant byte address 0x44 - assertion arg 0']
  #allocation8 [shape = 'u32[]', space=smem, size = 0x4, offset = 0x48, fixed_abs, tag = 'smem constant byte address 0x48 - assertion arg 1']
  %s0 = inlined_call_operand.vmem [shape: s32[2], index: 0, kind: input, shape index: {}]
  %s1 = inlined_call_operand.vmem [shape: f32[8,128], index: 1, kind: input, shape index: {}]
  %s2 = inlined_call_operand.hbm [shape: f32[2,8,128], index: 2, kind: input, shape index: {}, may-alias: {2,3}]
  %s3 = inlined_call_operand.hbm [shape: f32[2,8,128], index: 3, kind: output, shape index: {}, may-alias: {2,3}]
  %s4 = sld [smem:[#allocation0]]
  $region41: #{tpu_custom_call.1} parent=0
    _
  %s6 = ssub.s32 1, %s4
  %s7 = scalar_select 0, %s6, %s4
  $region1: #{tpu_custom_call.1} parent=0
    #allocation3 [shape = 'u8[512]{0}', space=smem, size = 0x200, scoped, tag = 'input window, operand 0, single buffered']
    #allocation4 [shape = 's32[2]{0}', space=sflag, size = 0x8, scoped, tag = 'scoped memory for tpu_custom_call.1']
    %8 = vsyncpa [#allocation4], 0
    loop: start=0, step=1, limit=3
    $region2: #{tpu_custom_call.1} parent=1 // loop_pre_header
      _
    $region3: #{tpu_custom_call.1} parent=1 // loop_header
      %s10 = sphi 0, %s14
      %p11 = scmp.ge.s32.totalorder %s10, 3
      %s17 = sphi 0, %s17
      %s19 = sphi 0, %s17
      %s27 = sphi 0, %s19
      %s31 = sphi 0, %s31
      %s33 = sphi 0, %s31
      %s41 = sphi 0, %s33
    $region4: #{tpu_custom_call.1} parent=1 // loop_header_branch
      %13 = sbr.rel (%p11) target = $region8
    $region5: #{tpu_custom_call.1} parent=1 // loop_body
      %s15 = ssub.s32 %s10, 1
      %s16 = sadd.s32 %s10, 1
      %s18 = sadd.s32 %s17, 1
      %p20 = scmp.eq.s32.totalorder %s10, 1
      %p21 = scmp.ne.s32.totalorder %s17, %s19
      %p22 = scmp.eq.s32.totalorder %s10, 0
      %p23 = por %p21, %p22
      %p24 = scmp.ne.s32.totalorder %s17, %s19
      %p25 = scmp.eq.s32.totalorder %s15, 1
      %p26 = por %p24, %p25
      %p28 = scmp.ne.s32.totalorder %s19, %s27
      %p29 = scmp.eq.s32.totalorder %s15, 0
      %p30 = por %p28, %p29
      %s32 = sadd.s32 %s31, 1
      %p34 = scmp.eq.s32.totalorder %s10, 1
      %p35 = scmp.ne.s32.totalorder %s31, %s33
      %p36 = scmp.eq.s32.totalorder %s10, 0
      %p37 = por %p35, %p36
      %p38 = scmp.ne.s32.totalorder %s31, %s33
      %p39 = scmp.eq.s32.totalorder %s15, 1
      %p40 = por %p38, %p39
      %p42 = scmp.ne.s32.totalorder %s33, %s41
      %p43 = scmp.eq.s32.totalorder %s15, 0
      %p44 = por %p42, %p43
      %p45 = scmp.le.s32.totalorder 1, %s10
      // Predicated region
      $region9: #{tpu_custom_call.1} parent=5 // pred_check
        %p46 = pneg %p45
      $region10: #{tpu_custom_call.1} parent=5 // pred_check_branch
        %48 = sbr.rel (%p46) target = $region12
      $region11: #{tpu_custom_call.1} parent=5 // pred_region
        %s49 = ssub.s32 %s10, 1
        // Predicated region
        $region13: #{tpu_custom_call.1} parent=11 // pred_check
          %p50 = pneg %p30
        $region14: #{tpu_custom_call.1} parent=11 // pred_check_branch
          %52 = sbr.rel (%p50) target = $region16
        $region15: #{tpu_custom_call.1} parent=11 // pred_region
          %s54 = ssub.s32 16, 16
          %55 = vsyncadd [#allocation4], %s54
          %s57 = sshll.u32 %s0, 4
          %s58 = int_to_ptr.vmem [resolvable:$true] %s57
          %60 = dma.vmem_to_smem %s58, 16, [#allocation3], [#allocation4]
        $region16: #{tpu_custom_call.1} parent=11 // pred_fallthru
          _
        // Predicated region
        $region17: #{tpu_custom_call.1} parent=11 // pred_check
          %p61 = pneg %p44
        $region18: #{tpu_custom_call.1} parent=11 // pred_check_branch
          %63 = sbr.rel (%p61) target = $region20
        $region19: #{tpu_custom_call.1} parent=11 // pred_region
          _
        $region20: #{tpu_custom_call.1} parent=11 // pred_fallthru
          _
      $region12: #{tpu_custom_call.1} parent=5 // pred_fallthru
        _
      %p64 = scmp.lt.s32.totalorder %s10, 2
      // Predicated region
      $region21: #{tpu_custom_call.1} parent=5 // pred_check
        %p65 = pneg %p64
      $region22: #{tpu_custom_call.1} parent=5 // pred_check_branch
        %67 = sbr.rel (%p65) target = $region24
      $region23: #{tpu_custom_call.1} parent=5 // pred_region
        _
      $region24: #{tpu_custom_call.1} parent=5 // pred_fallthru
        _
      %p68 = scmp.le.s32.totalorder 1, %s10
      // Predicated region
      $region25: #{tpu_custom_call.1} parent=5 // pred_check
        %p69 = pneg %p68
      $region26: #{tpu_custom_call.1} parent=5 // pred_check_branch
        %71 = sbr.rel (%p69) target = $region28
      $region27: #{tpu_custom_call.1} parent=5 // pred_region
        %s72 = ssub.s32 %s10, 1
        // Predicated region
        $region29: #{tpu_custom_call.1} parent=27 // pred_check
          %p73 = pneg %p30
        $region30: #{tpu_custom_call.1} parent=27 // pred_check_branch
          %75 = sbr.rel (%p73) target = $region32
        $region31: #{tpu_custom_call.1} parent=27 // pred_region
          %76 = dma.done [#allocation4], 16
        $region32: #{tpu_custom_call.1} parent=27 // pred_fallthru
          _
        %77 = sfence
        %p78 = pneg %p30
        %p79 = pneg %p26
        %p80 = pneg %p44
        %p81 = pneg %p40
        %s82 = sld [smem:[#allocation3 + %s15]]
        %p83 = scmp.eq.s32.totalorder %s82, 0
        // Predicated region
        $region33: #{tpu_custom_call.1} parent=27 // pred_check
          %p84 = pneg %p83
        $region34: #{tpu_custom_call.1} parent=27 // pred_check_branch
          %86 = sbr.rel (%p84) target = $region36
        $region35: #{tpu_custom_call.1} parent=27 // pred_region
          %s87 = smul.u32 %s15, 8
          %s88 = smul.addr %s87, 16
          %s89 = scalar_lea.hbm %s3, %s88
          // Predicated region
          $region37: #{tpu_custom_call.1} parent=35 // pred_check
            _
          $region38: #{tpu_custom_call.1} parent=35 // pred_check_branch
            %91 = sbr.rel target = $region40
          $region39: #{tpu_custom_call.1} parent=35 // pred_region
            %92 = sst [smem:[#allocation7]] [#allocation6]
            %93 = sst [smem:[#allocation8]] [#allocation5]
          $region40: #{tpu_custom_call.1} parent=35 // pred_fallthru
            _
          %95 = shalt.err (0)
          %s97 = sshll.u32 %s1, 4
          %s98 = int_to_ptr.vmem [resolvable:$true] %s97
          %100 = dma.vmem_to_hbm [thread:$0]  %s98, 128, %s89, [#allocation2]
          %s101 = smul.u32 8, 1
          %s102 = sshll.u32 %s101, 4
          %103 = dma.done [#allocation2], %s102
        $region36: #{tpu_custom_call.1} parent=27 // pred_fallthru
          _
      $region28: #{tpu_custom_call.1} parent=5 // pred_fallthru
        _
    $region6: #{tpu_custom_call.1} parent=1 // loop_footer
      %s14 = sadd.s32 1, %s10
    $region7: #{tpu_custom_call.1} parent=1 // loop_footer_branch
      %9 = sbr.rel target = $region3
    $region8: #{tpu_custom_call.1} parent=1 // loop_exit
      _
    %104 = vsyncpa [#allocation4], 1
    %s105 = scalar_lea.sflag [#allocation4], 1
    %106 = vsyncpa %s105, 1
  %107 = vsyncmov [#allocation2]
  %s108 = vpop.sfrf %107
  %p109 = scmp.eq.s32.totalorder %s108, 0
  %p110 = pneg %p109
  %112 = shalt.err (%p110)

</llo_original>
